<compile_context>
chip_gen: v5e
topology: v5e:2x2
jax: 0.10.0
libtpu: 0.0.40
codegen_flags: <defaults>
</compile_context>

<pallas_src>
import functools

import jax
import jax.numpy as jnp
from jax.experimental import pallas as pl
from jax.experimental.pallas import tpu as pltpu


def _pow(base, gamma):
    """base ** gamma with TPU-safe lowering.

    Integer gamma -> repeated multiplies (matches torch.pow for any base).
    Non-integer gamma -> clamp the base to >= 0 (pt = p_t + smooth can exceed
    1 when p_t ~ 1, making 1 - pt slightly negative -> NaN under a float pow)
    and use exp(gamma * log(base)).
    """
    if float(gamma) == int(gamma) and int(gamma) >= 0:
        out = jnp.ones_like(base)
        for _ in range(int(gamma)):
            out = out * base
        return out
    base = jnp.maximum(base, 0.0)
    return jnp.where(base > 0.0,
                     jnp.exp(gamma * jnp.log(jnp.maximum(base, 1e-30))),
                     0.0)


def _focal_loss_kernel(*refs, gamma, smooth, alpha_scalar, hw, block_cols,
                       needs_mask):
    if alpha_scalar is None:
        logit_ref, target_ref, alpha_ref, out_ref, acc_ref = refs
    else:
        logit_ref, target_ref, out_ref, acc_ref = refs
        alpha_ref = None

    j = pl.program_id(1)

    @pl.when(j == 0)
    def _init():
        acc_ref[...] = jnp.zeros_like(acc_ref)

    # Classes on the sublane axis, pixels on the lane axis.
    x = logit_ref[0].astype(jnp.float32)            # (C, BC)
    t = target_ref[0]                               # (1, BC) int32

    # Softmax statistics along C; the full prob matrix is never materialized.
    m = jnp.max(x, axis=0, keepdims=True)           # (1, BC)
    e = jnp.exp(x - m)                              # (C, BC)
    denom = jnp.sum(e, axis=0, keepdims=True)       # (1, BC)

    # Gather the target-class numerator with a one-hot compare (C is tiny).
    cls = jax.lax.broadcasted_iota(jnp.int32, x.shape, 0)   # (C, BC)
    onehot = (cls == t).astype(jnp.float32)                 # (C, BC)
    e_t = jnp.sum(e * onehot, axis=0, keepdims=True)        # (1, BC)

    # Division moved to the EUP via approximate reciprocal.
    pt = e_t * pl.reciprocal(denom, approx=True) + smooth   # (1, BC)
    logpt = jnp.log(pt)

    if alpha_ref is None:
        alpha_c = alpha_scalar                               # uniform alpha
    else:
        alpha_c = jnp.sum(alpha_ref[...] * onehot, axis=0, keepdims=True)

    loss = (-alpha_c) * _pow(1.0 - pt, gamma) * logpt        # (1, BC)

    if needs_mask:
        col = j * block_cols + jax.lax.broadcasted_iota(
            jnp.int32, (1, block_cols), 1)
        loss = jnp.where(col < hw, loss, 0.0)

    # Wide accumulator: plain elementwise add each grid step; the cross-lane
    # reduce to a scalar happens only once per image below.
    acc_ref[...] += loss

    @pl.when(j == pl.num_programs(1) - 1)
    def _finalize():
        out_ref[...] = jnp.sum(acc_ref[...], axis=1,
                               keepdims=True).reshape(1, 1, 1)


def focal_loss_ori(logit, target, *, num_class=None, alpha=None, gamma=2.0,
                   smooth=1e-4, reduction="mean", max_block_cols=32768):
    """Pallas implementation of FocalLoss_Ori.forward (ignore_index=None)."""
    # TODO(synk): ignore_index masking (valid_mask + mean over valid pixels)
    # is not implemented; only the default ignore_index=None path is covered.
    N, C = logit.shape[:2]
    if num_class is None:
        num_class = C

    # Resolve alpha the same way the torch constructor does.  A uniform alpha
    # is folded into the kernel as a compile-time scalar (no gather needed).
    alpha_scalar = None
    alpha_arr = None
    if alpha is None:
        alpha_scalar = 1.0
    elif isinstance(alpha, (int, float)):
        alpha_scalar = float(alpha)
    else:
        alpha_arr = jnp.asarray(alpha, jnp.float32).reshape(-1, 1)   # (C, 1)
        if alpha_arr.shape[0] != num_class:
            raise RuntimeError('the length not equal to number of class')

    # Natural NCHW layout: no transpose, no dtype cast in the wrapper.  bf16
    # logits are DMA'd as bf16 and upcast inside the kernel.
    x = logit.reshape(N, C, -1)
    t = target.reshape(N, 1, -1).astype(jnp.int32)
    HW = x.shape[-1]
    M = N * HW

    # Lane-dense tiles: pixels padded up to a multiple of 128 / block_cols.
    block_cols = min(int(max_block_cols), pl.cdiv(HW, 128) * 128)
    HWp = pl.cdiv(HW, block_cols) * block_cols
    if HWp != HW:
        x = jnp.pad(x, ((0, 0), (0, 0), (0, HWp - HW)))
        t = jnp.pad(t, ((0, 0), (0, 0), (0, HWp - HW)))

    grid = (N, HWp // block_cols)

    kernel = functools.partial(
        _focal_loss_kernel,
        gamma=float(gamma), smooth=float(smooth), alpha_scalar=alpha_scalar,
        hw=HW, block_cols=block_cols, needs_mask=(HWp != HW))

    in_specs = [
        pl.BlockSpec((1, C, block_cols), lambda n, j: (n, 0, j)),   # logits
        pl.BlockSpec((1, 1, block_cols), lambda n, j: (n, 0, j)),   # targets
    ]
    inputs = [x, t]
    if alpha_arr is not None:
        in_specs.append(pl.BlockSpec((num_class, 1), lambda n, j: (0, 0)))
        inputs.append(alpha_arr)

    partial_sums = pl.pallas_call(
        kernel,
        out_shape=jax.ShapeDtypeStruct((N, 1, 1), jnp.float32),
        grid_spec=pltpu.PrefetchScalarGridSpec(
            num_scalar_prefetch=0,
            grid=grid,
            in_specs=in_specs,
            out_specs=pl.BlockSpec((1, 1, 1), lambda n, j: (n, 0, 0)),
            scratch_shapes=[pltpu.VMEM((1, block_cols), jnp.float32)],
        ),
        compiler_params=pltpu.CompilerParams(
            dimension_semantics=("parallel", "arbitrary")),
    )(*inputs)

    total = jnp.sum(partial_sums)
    if reduction == "mean":
        return total / M
    elif reduction == "sum":
        return total
    else:
        # TODO(synk): reduction='none' (per-pixel loss tensor) would need a
        # per-pixel output spec; only 'mean'/'sum' are supported here.
        raise NotImplementedError("reduction='none' not implemented")


def _focal_loss_reference(logit, target, *, num_class, alpha=None, gamma=2,
                          smooth=1e-4):
    """Pure-JAX reference mirroring the torch forward (mean reduction)."""
    N, C = logit.shape[:2]
    if alpha is None:
        alpha_v = jnp.ones((num_class,), jnp.float32)
    else:
        alpha_v = jnp.asarray(alpha, jnp.float32)
    prob = jax.nn.softmax(logit.astype(jnp.float32), axis=1)
    prob = jnp.transpose(prob.reshape(N, C, -1), (0, 2, 1)).reshape(-1, C)
    t = target.reshape(-1).astype(jnp.int32)
    pt = jnp.take_along_axis(prob, t[:, None], axis=1)[:, 0] + smooth
    logpt = jnp.log(pt)
    if float(gamma) == int(gamma):
        w = jnp.ones_like(pt)
        for _ in range(int(gamma)):
            w = w * (1.0 - pt)
    else:
        w = jnp.power(jnp.maximum(1.0 - pt, 0.0), gamma)
    loss = -alpha_v[t] * w * logpt
    return loss.mean()


if __name__ == "__main__":
    key = jax.random.PRNGKey(0)
    k1, k2, k3, k4 = jax.random.split(key, 4)

    # Case 1: module defaults (num_class=5, alpha=None, gamma=2, mean).
    N, C, H, W = 2, 5, 16, 16
    logit = jax.random.normal(k1, (N, C, H, W), dtype=jnp.float32)
    target = jax.random.randint(k2, (N, H, W), 0, C, dtype=jnp.int32)
    out = jax.block_until_ready(
        focal_loss_ori(logit, target, num_class=C, gamma=2))
    ref = _focal_loss_reference(logit, target, num_class=C, gamma=2)
    assert jnp.allclose(out, ref, rtol=3e-3, atol=1e-5), (out, ref)

    # Case 2: per-class alpha + lane padding (HW not a multiple of 128).
    H2, W2 = 10, 10
    alpha_list = [0.5, 1.0, 1.5, 2.0, 0.75]
    logit2 = jax.random.normal(k3, (N, C, H2, W2), dtype=jnp.float32)
    target2 = jax.random.randint(k4, (N, H2, W2), 0, C, dtype=jnp.int32)
    out2 = jax.block_until_ready(
        focal_loss_ori(logit2, target2, num_class=C, alpha=alpha_list, gamma=2))
    ref2 = _focal_loss_reference(logit2, target2, num_class=C,
                                 alpha=alpha_list, gamma=2)
    assert jnp.allclose(out2, ref2, rtol=3e-3, atol=1e-5), (out2, ref2)

    # Case 3: non-integer gamma (exercises the clamped exp/log pow path).
    out3 = jax.block_until_ready(
        focal_loss_ori(logit, target, num_class=C, gamma=1.5))
    ref3 = _focal_loss_reference(logit, target, num_class=C, gamma=1.5)
    assert jnp.allclose(out3, ref3, rtol=3e-3, atol=1e-5), (out3, ref3)

    print("KERNEL_OK")
</pallas_src>

<mosaic_0001>
module attributes {stable_mosaic.version = 11 : i64} {
  func.func @_focal_loss_kernel(%arg0: i32, %arg1: i32, %arg2: memref<1x5x256xf32, #tpu.memory_space<vmem>>, %arg3: memref<1x1x256xi32, #tpu.memory_space<vmem>>, %arg4: memref<1x1x1xf32, #tpu.memory_space<vmem>>, %arg5: memref<1x256xf32, #tpu.memory_space<vmem>>) attributes {dimension_semantics = [#tpu.dimension_semantics<parallel>, #tpu.dimension_semantics<arbitrary>], iteration_bounds = array<i64: 2, 1>, scalar_prefetch = 0 : i64, scratch_operands = 1 : i64, tpu.core_type = #tpu.core_type<tc>, window_params = [{transform_indices = @transform_0, window_bounds = array<i64: 1, 5, 256>}, {transform_indices = @transform_1, window_bounds = array<i64: 1, 1, 256>}, {transform_indices = @transform_2, window_bounds = array<i64: 1, 1, 1>}]} {
    %c0_i32 = arith.constant 0 : i32
    %0 = arith.cmpi eq, %arg1, %c0_i32 : i32
    %1 = arith.extui %0 : i1 to i32
    %c0_i32_0 = arith.constant 0 : i32
    %2 = arith.cmpi ne, %1, %c0_i32_0 : i32
    scf.if %2 {
      %cst_18 = arith.constant 0.000000e+00 : f32
      %41 = vector.broadcast %cst_18 : f32 to vector<1x256xf32>
      %c0_19 = arith.constant 0 : index
      %c0_20 = arith.constant 0 : index
      %42 = vector.load %arg5[%c0_19, %c0_20] : memref<1x256xf32, #tpu.memory_space<vmem>>, vector<1x256xf32>
      tpu.vector_store %arg5[%c0_19, %c0_20], %41 {strides = array<i32>} : memref<1x256xf32, #tpu.memory_space<vmem>>, vector<1x256xf32>,
    } else {
    }
    %c0 = arith.constant 0 : index
    %c0_1 = arith.constant 0 : index
    %c0_2 = arith.constant 0 : index
    %3 = vector.load %arg2[%c0, %c0_1, %c0_2] : memref<1x5x256xf32, #tpu.memory_space<vmem>>, vector<1x5x256xf32>
    %4 = vector.shape_cast %3 : vector<1x5x256xf32> to vector<5x256xf32>
    %c0_3 = arith.constant 0 : index
    %c0_4 = arith.constant 0 : index
    %c0_5 = arith.constant 0 : index
    %5 = vector.load %arg3[%c0_3, %c0_4, %c0_5] : memref<1x1x256xi32, #tpu.memory_space<vmem>>, vector<1x1x256xi32>
    %6 = vector.shape_cast %5 : vector<1x1x256xi32> to vector<1x256xi32>
    %cst = arith.constant dense<0xFF800000> : vector<256xf32>
    %7 = vector.multi_reduction <maximumf>, %4, %cst [0] : vector<5x256xf32> to vector<256xf32>
    %8 = vector.shape_cast %7 : vector<256xf32> to vector<1x256xf32>
    %9 = vector.broadcast %8 : vector<1x256xf32> to vector<5x256xf32>
    %10 = arith.subf %4, %9 : vector<5x256xf32>
    %11 = math.exp %10 : vector<5x256xf32>
    %cst_6 = arith.constant dense<0.000000e+00> : vector<256xf32>
    %12 = vector.multi_reduction <add>, %11, %cst_6 [0] : vector<5x256xf32> to vector<256xf32>
    %13 = vector.shape_cast %12 : vector<256xf32> to vector<1x256xf32>
    %14 = tpu.iota {dimensions = array<i32: 0>} : vector<5x256xi32>
    %15 = vector.broadcast %6 : vector<1x256xi32> to vector<5x256xi32>
    %16 = arith.cmpi eq, %14, %15 : vector<5x256xi32>
    %17 = arith.extui %16 : vector<5x256xi1> to vector<5x256xi32>
    %18 = arith.sitofp %17 : vector<5x256xi32> to vector<5x256xf32>
    %19 = arith.mulf %11, %18 : vector<5x256xf32>
    %cst_7 = arith.constant dense<0.000000e+00> : vector<256xf32>
    %20 = vector.multi_reduction <add>, %19, %cst_7 [0] : vector<5x256xf32> to vector<256xf32>
    %21 = vector.shape_cast %20 : vector<256xf32> to vector<1x256xf32>
    %22 = tpu.reciprocal %13 {approx = true} : vector<1x256xf32> -> vector<1x256xf32>
    %23 = arith.mulf %21, %22 : vector<1x256xf32>
    %cst_8 = arith.constant 9.99999974E-5 : f32
    %24 = vector.broadcast %cst_8 : f32 to vector<1x256xf32>
    %25 = arith.addf %23, %24 : vector<1x256xf32>
    %26 = math.log %25 : vector<1x256xf32>
    %cst_9 = arith.constant 1.000000e+00 : f32
    %27 = vector.broadcast %cst_9 : f32 to vector<1x256xf32>
    %28 = arith.subf %27, %25 : vector<1x256xf32>
    %cst_10 = arith.constant 1.000000e+00 : f32
    %29 = vector.broadcast %cst_10 : f32 to vector<1x256xf32>
    %30 = arith.mulf %29, %28 : vector<1x256xf32>
    %31 = arith.mulf %30, %28 : vector<1x256xf32>
    %cst_11 = arith.constant -1.000000e+00 : f32
    %32 = vector.broadcast %cst_11 : f32 to vector<1x256xf32>
    %33 = arith.mulf %32, %31 : vector<1x256xf32>
    %34 = arith.mulf %33, %26 : vector<1x256xf32>
    %c0_12 = arith.constant 0 : index
    %c0_13 = arith.constant 0 : index
    %35 = vector.load %arg5[%c0_12, %c0_13] : memref<1x256xf32, #tpu.memory_space<vmem>>, vector<1x256xf32>
    %36 = arith.addf %35, %34 : vector<1x256xf32>
    %c0_14 = arith.constant 0 : index
    %c0_15 = arith.constant 0 : index
    %37 = vector.load %arg5[%c0_14, %c0_15] : memref<1x256xf32, #tpu.memory_space<vmem>>, vector<1x256xf32>
    tpu.vector_store %arg5[%c0_14, %c0_15], %36 {strides = array<i32>} : memref<1x256xf32, #tpu.memory_space<vmem>>, vector<1x256xf32>,
    %c0_i32_16 = arith.constant 0 : i32
    %38 = arith.cmpi eq, %arg1, %c0_i32_16 : i32
    %39 = arith.extui %38 : i1 to i32
    %c0_i32_17 = arith.constant 0 : i32
    %40 = arith.cmpi ne, %39, %c0_i32_17 : i32
    scf.if %40 {
      %c0_18 = arith.constant 0 : index
      %c0_19 = arith.constant 0 : index
      %41 = vector.load %arg5[%c0_18, %c0_19] : memref<1x256xf32, #tpu.memory_space<vmem>>, vector<1x256xf32>
      %cst_20 = arith.constant dense<0.000000e+00> : vector<1xf32>
      %42 = vector.multi_reduction <add>, %41, %cst_20 [1] : vector<1x256xf32> to vector<1xf32>
      %43 = vector.shape_cast %42 : vector<1xf32> to vector<1x1xf32>
      %44 = vector.shape_cast %43 : vector<1x1xf32> to vector<1x1x1xf32>
      %c0_21 = arith.constant 0 : index
      %c0_22 = arith.constant 0 : index
      %c0_23 = arith.constant 0 : index
      %45 = vector.load %arg4[%c0_21, %c0_22, %c0_23] : memref<1x1x1xf32, #tpu.memory_space<vmem>>, vector<1x1x1xf32>
      tpu.vector_store %arg4[%c0_21, %c0_22, %c0_23], %44 {strides = array<i32>} : memref<1x1x1xf32, #tpu.memory_space<vmem>>, vector<1x1x1xf32>,
    } else {
    }
    return
  }
  func.func @transform_0(%arg0: i32, %arg1: i32) -> (i32, i32, i32) {
    %c0_i32 = arith.constant 0 : i32
    %c0_i32_0 = arith.constant 0 : i32
    return %arg0, %c0_i32, %arg1 : i32, i32, i32
  }
  func.func @transform_1(%arg0: i32, %arg1: i32) -> (i32, i32, i32) {
    %c0_i32 = arith.constant 0 : i32
    %c0_i32_0 = arith.constant 0 : i32
    return %arg0, %c0_i32, %arg1 : i32, i32, i32
  }
  func.func @transform_2(%arg0: i32, %arg1: i32) -> (i32, i32, i32) {
    %c0_i32 = arith.constant 0 : i32
    %c0_i32_0 = arith.constant 0 : i32
    %c0_i32_1 = arith.constant 0 : i32
    return %arg0, %c0_i32, %c0_i32_0 : i32, i32, i32
  }
}

</mosaic_0001>

<llo_original>
// kernel: tpu_custom_call.1
$region0: #{tpu_custom_call.1}
  #allocation0 [shape = 'u32[]', space=smem, size = 0x4, offset = 0x4, fixed_abs, tag = 'smem constant byte address 0x4 - core index']
  #allocation1 [shape = 'u32[72,128]{1,0:T(1,128)}', space=vmem, size = 0x9000, scoped, tag = 'internal scratch']
  #allocation2 [shape = 'f32[1,256]{1,0:T(1,128)}', space=vmem, size = 0x400, scoped, tag = 'scratch operand']
  %s0 = inlined_call_operand.vmem [shape: f32[2,5,256], index: 0, kind: input, shape index: {}]
  %s1 = inlined_call_operand.vmem [shape: s32[2,1,256], index: 1, kind: input, shape index: {}]
  %s2 = inlined_call_operand.vmem [shape: f32[2,1,1], index: 2, kind: output, shape index: {}]
  %s3 = sld [smem:[#allocation0]]
  $region49: #{tpu_custom_call.1} parent=0
    _
  %s5 = ssub.s32 1, %s3
  %s6 = scalar_select 0, %s5, %s3
  loop: start=0, step=1, limit=4
  $region2: #{tpu_custom_call.1} parent=0 // loop_pre_header
    _
  $region3: #{tpu_custom_call.1} parent=0 // loop_header
    %s8 = sphi 0, %s12
    %p9 = scmp.ge.s32.totalorder %s8, 4
    %s15 = sphi 0, %s27
    %s16 = sphi 0, %s23
    %s17 = sphi 0, %s15
    %s18 = sphi 0, %s16
    %s19 = sphi 0, %s17
    %s20 = sphi 0, %s18
    %s32 = sphi 0, %s34
    %s35 = sphi 0, %s32
    %s36 = sphi 0, %s35
    %s52 = sphi 0, %s36
    %s60 = sphi 0, %s62
    %s63 = sphi 0, %s60
    %s64 = sphi 0, %s63
    %s80 = sphi 0, %s64
    %s86 = sphi 0, %s88
    %s89 = sphi 0, %s86
    %s90 = sphi 0, %s89
    %s106 = sphi 0, %s90
  $region4: #{tpu_custom_call.1} parent=0 // loop_header_branch
    %11 = sbr.rel (%p9) target = $region8
  $region5: #{tpu_custom_call.1} parent=0 // loop_body
    %s13 = ssub.s32 %s8, 1
    %s14 = ssub.s32 %s8, 2
    %s21 = sadd.s32 1, %s16
    %p22 = scmp.ge.s32.totalorder %s21, 1
    %s23 = scalar_select %p22, 0, %s21
    %s24 = sadd.s32 1, %s15
    %s25 = scalar_select %p22, %s24, %s15
    %p26 = scmp.ge.s32.totalorder %s25, 2
    %s27 = scalar_select %p26, 0, %s25
    %s28 = ssub.s32 %s15, %s27
    %s29 = ssub.s32 %s16, %s23
    %s30 = sor.u32 %s28, %s29
    %p31 = scmp.eq.s32.totalorder %s30, 0
    %s33 = sadd.s32 %s32, 1
    %s34 = scalar_select %p31, %s32, %s33
    %p37 = pneg %p31
    %p38 = scmp.eq.s32.totalorder %s8, 1
    %p39 = por %p37, %p38
    %p40 = scmp.ne.s32.totalorder %s32, %s35
    %p41 = scmp.eq.s32.totalorder %s8, 0
    %p42 = por %p40, %p41
    %p43 = scmp.ne.s32.totalorder %s32, %s35
    %p44 = scmp.eq.s32.totalorder %s13, 1
    %p45 = por %p43, %p44
    %p46 = scmp.ne.s32.totalorder %s35, %s36
    %p47 = scmp.eq.s32.totalorder %s13, 0
    %p48 = por %p46, %p47
    %p49 = scmp.ne.s32.totalorder %s35, %s36
    %p50 = scmp.eq.s32.totalorder %s14, 1
    %p51 = por %p49, %p50
    %p53 = scmp.ne.s32.totalorder %s36, %s52
    %p54 = scmp.eq.s32.totalorder %s14, 0
    %p55 = por %p53, %p54
    %s56 = ssub.s32 %s15, %s27
    %s57 = ssub.s32 %s16, %s23
    %s58 = sor.u32 %s56, %s57
    %p59 = scmp.eq.s32.totalorder %s58, 0
    %s61 = sadd.s32 %s60, 1
    %s62 = scalar_select %p59, %s60, %s61
    %p65 = pneg %p59
    %p66 = scmp.eq.s32.totalorder %s8, 1
    %p67 = por %p65, %p66
    %p68 = scmp.ne.s32.totalorder %s60, %s63
    %p69 = scmp.eq.s32.totalorder %s8, 0
    %p70 = por %p68, %p69
    %p71 = scmp.ne.s32.totalorder %s60, %s63
    %p72 = scmp.eq.s32.totalorder %s13, 1
    %p73 = por %p71, %p72
    %p74 = scmp.ne.s32.totalorder %s63, %s64
    %p75 = scmp.eq.s32.totalorder %s13, 0
    %p76 = por %p74, %p75
    %p77 = scmp.ne.s32.totalorder %s63, %s64
    %p78 = scmp.eq.s32.totalorder %s14, 1
    %p79 = por %p77, %p78
    %p81 = scmp.ne.s32.totalorder %s64, %s80
    %p82 = scmp.eq.s32.totalorder %s14, 0
    %p83 = por %p81, %p82
    %s84 = ssub.s32 %s15, %s27
    %p85 = scmp.eq.s32.totalorder %s84, 0
    %s87 = sadd.s32 %s86, 1
    %s88 = scalar_select %p85, %s86, %s87
    %p91 = pneg %p85
    %p92 = scmp.eq.s32.totalorder %s8, 1
    %p93 = por %p91, %p92
    %p94 = scmp.ne.s32.totalorder %s86, %s89
    %p95 = scmp.eq.s32.totalorder %s8, 0
    %p96 = por %p94, %p95
    %p97 = scmp.ne.s32.totalorder %s86, %s89
    %p98 = scmp.eq.s32.totalorder %s13, 1
    %p99 = por %p97, %p98
    %p100 = scmp.ne.s32.totalorder %s89, %s90
    %p101 = scmp.eq.s32.totalorder %s13, 0
    %p102 = por %p100, %p101
    %p103 = scmp.ne.s32.totalorder %s89, %s90
    %p104 = scmp.eq.s32.totalorder %s14, 1
    %p105 = por %p103, %p104
    %p107 = scmp.ne.s32.totalorder %s90, %s106
    %p108 = scmp.eq.s32.totalorder %s14, 0
    %p109 = por %p107, %p108
    %p110 = scmp.le.s32.totalorder 1, %s8
    %p111 = scmp.lt.s32.totalorder %s8, 3
    %p112 = pnand %p110, %p111
    %p113 = pneg %p112
    // Predicated region
    $region9: #{tpu_custom_call.1} parent=5 // pred_check
      _
    $region10: #{tpu_custom_call.1} parent=5 // pred_check_branch
      %115 = sbr.rel (%p112) target = $region12
    $region11: #{tpu_custom_call.1} parent=5 // pred_region
      %s116 = ssub.s32 %s8, 1
    $region12: #{tpu_custom_call.1} parent=5 // pred_fallthru
      _
    %p117 = scmp.lt.s32.totalorder %s8, 2
    // Predicated region
    $region13: #{tpu_custom_call.1} parent=5 // pred_check
      %p118 = pneg %p117
    $region14: #{tpu_custom_call.1} parent=5 // pred_check_branch
      %120 = sbr.rel (%p118) target = $region16
    $region15: #{tpu_custom_call.1} parent=5 // pred_region
      // Predicated region
      $region17: #{tpu_custom_call.1} parent=15 // pred_check
        %p121 = pneg %p42
      $region18: #{tpu_custom_call.1} parent=15 // pred_check_branch
        %123 = sbr.rel (%p121) target = $region20
      $region19: #{tpu_custom_call.1} parent=15 // pred_region
        %s124 = smul.u32 2, %s16
        %p125 = scmp.lt.s32.totalorder %s15, 1
        %s126 = scalar_select %p125, %s15, 1
        %p127 = scmp.lt.s32.totalorder %s124, 1
        %s128 = scalar_select %p127, %s124, 1
        %s129 = smul.addr %s126, 2
        %s130 = sadd.s32 %s128, %s129
        %s131 = smul.addr %s130, 8
        %s132 = scalar_lea.vmem %s0, %s131
        %s133 = smul.u32 2, %s16
      $region20: #{tpu_custom_call.1} parent=15 // pred_fallthru
        _
      // Predicated region
      $region21: #{tpu_custom_call.1} parent=15 // pred_check
        %p134 = pneg %p70
      $region22: #{tpu_custom_call.1} parent=15 // pred_check_branch
        %136 = sbr.rel (%p134) target = $region24
      $region23: #{tpu_custom_call.1} parent=15 // pred_region
        %s137 = smul.u32 2, %s16
        %p138 = scmp.lt.s32.totalorder %s15, 1
        %s139 = scalar_select %p138, %s15, 1
        %p140 = scmp.lt.s32.totalorder %s137, 1
        %s141 = scalar_select %p140, %s137, 1
        %s142 = smul.addr %s139, 2
        %s143 = sadd.s32 %s141, %s142
        %s144 = scalar_lea.vmem %s1, %s143
        %s145 = smul.u32 2, %s16
      $region24: #{tpu_custom_call.1} parent=15 // pred_fallthru
        _
    $region16: #{tpu_custom_call.1} parent=5 // pred_fallthru
      _
    %p146 = scmp.le.s32.totalorder 1, %s8
    %p147 = scmp.lt.s32.totalorder %s8, 3
    %p148 = pnand %p146, %p147
    %p149 = pneg %p148
    // Predicated region
    $region25: #{tpu_custom_call.1} parent=5 // pred_check
      _
    $region26: #{tpu_custom_call.1} parent=5 // pred_check_branch
      %151 = sbr.rel (%p148) target = $region28
    $region27: #{tpu_custom_call.1} parent=5 // pred_region
      %s152 = ssub.s32 %s8, 1
      %s153 = smul.u32 2, %s18
      %p154 = scmp.lt.s32.totalorder %s17, 1
      %s155 = scalar_select %p154, %s17, 1
      %p156 = scmp.lt.s32.totalorder %s153, 1
      %s157 = scalar_select %p156, %s153, 1
      %s158 = smul.addr %s155, 2
      %s159 = sadd.s32 %s157, %s158
      %s160 = smul.addr %s159, 8
      %s161 = scalar_lea.vmem %s0, %s160
      %p162 = pneg %p48
      %p163 = pneg %p45
      %s164 = smul.u32 2, %s18
      %p165 = scmp.lt.s32.totalorder %s17, 1
      %s166 = scalar_select %p165, %s17, 1
      %p167 = scmp.lt.s32.totalorder %s164, 1
      %s168 = scalar_select %p167, %s164, 1
      %s169 = smul.addr %s166, 2
      %s170 = sadd.s32 %s168, %s169
      %s171 = scalar_lea.vmem %s1, %s170
      %p172 = pneg %p76
      %p173 = pneg %p73
      %p174 = pneg %p102
      %p175 = pneg %p99
      %p176 = scmp.lt.s32.totalorder %s17, 1
      %s177 = scalar_select %p176, %s17, 1
      %s178 = scalar_lea.vmem %s2, %s177
      %s179 = smul.u32 2, %s18
      %p180 = scmp.lt.s32.totalorder %s17, 1
      %s181 = scalar_select %p180, %s17, 1
      %p182 = scmp.lt.s32.totalorder %s179, 1
      %s183 = scalar_select %p182, %s179, 1
      %s184 = smul.addr %s181, 2
      %s185 = sadd.s32 %s183, %s184
      %s186 = smul.addr %s185, 8
      %s187 = scalar_lea.vmem %s0, %s186
      %s188 = smul.u32 2, %s18
      %s189 = smul.u32 2, %s18
      %p190 = scmp.lt.s32.totalorder %s17, 1
      %s191 = scalar_select %p190, %s17, 1
      %p192 = scmp.lt.s32.totalorder %s189, 1
      %s193 = scalar_select %p192, %s189, 1
      %s194 = smul.addr %s191, 2
      %s195 = sadd.s32 %s193, %s194
      %s196 = scalar_lea.vmem %s1, %s195
      %s197 = smul.u32 2, %s18
      %p198 = scmp.lt.s32.totalorder %s17, 1
      %s199 = scalar_select %p198, %s17, 1
      %s200 = scalar_lea.vmem %s2, %s199
      %p201 = scmp.eq.s32.totalorder %s18, 0
      // Predicated region
      $region29: #{tpu_custom_call.1} parent=27 // pred_check
        %p202 = pneg %p201
      $region30: #{tpu_custom_call.1} parent=27 // pred_check_branch
        %204 = sbr.rel (%p202) target = $region32
      $region31: #{tpu_custom_call.1} parent=27 // pred_region
        %v205 = vlaneseq
        %vm206 = vcmp.ge.s32.totalorder %v205, 0
        %vm207 = vcmp.lt.s32.totalorder %v205, 256
        %vm208 = vmand %vm206, %vm207
        %209 = vst.msk [vmem:[#allocation2] sm:$0x3] %vm208, 0.0
      $region32: #{tpu_custom_call.1} parent=27 // pred_fallthru
        _
      %v210 = vld [vmem:[%s187] sm:$0x1f]
      %v211 = vld [vmem:[%s187 + $0x8] sm:$0x1f]
      %v212 = vld [vmem:[%s196] sm:$0x3]
      %vm213 = vcmask 1044480
      %v214 = vsel %vm213, %v210, -inf
      %v215 = vrot.slane %v214, 4
      %v216 = vmax.f32 %v214, %v215
      %v217 = vrot.slane %v216, 2
      %v218 = vmax.f32 %v216, %v217
      %v219 = vrot.slane %v218, 1
      %v220 = vmax.f32 %v218, %v219
      %v221 = vsel %vm213, %v211, -inf
      %v222 = vrot.slane %v221, 4
      %v223 = vmax.f32 %v221, %v222
      %v224 = vrot.slane %v223, 2
      %v225 = vmax.f32 %v223, %v224
      %v226 = vrot.slane %v225, 1
      %v227 = vmax.f32 %v225, %v226
      %v228 = vsub.f32 %v210, %v220
      %v229 = vsub.f32 %v211, %v227
      %v230 = vmul.f32 %v228, 1.442695
      %v231 = vpow.pop %v230
      %v232 = vmul.f32 %v229, 1.442695
      %v233 = vpow.pop %v232
      %v234 = vsel %vm213, %v231, 0.0
      %v235 = vrot.slane %v234, 4
      %v236 = vadd.f32 %v234, %v235
      %v237 = vrot.slane %v236, 2
      %v238 = vadd.f32 %v236, %v237
      %v239 = vrot.slane %v238, 1
      %v240 = vadd.f32 %v238, %v239
      %v241 = vsel %vm213, %v233, 0.0
      %v242 = vrot.slane %v241, 4
      %v243 = vadd.f32 %v241, %v242
      %v244 = vrot.slane %v243, 2
      %v245 = vadd.f32 %v243, %v244
      %v246 = vrot.slane %v245, 1
      %v247 = vadd.f32 %v245, %v246
      %v248 = vlaneseq
      %v249 = vshrl.u32 %v248, 7
      %v250 = vperm.slane %v212, 0
      %v251 = vperm.slane %v212, 1
      %vm252 = vcmp.eq.s32.totalorder %v249, %v250
      %vm253 = vcmp.eq.s32.totalorder %v249, %v251
      %v254 = vsel %vm252, 1, 0
      %v255 = vsel %vm253, 1, 0
      %v256 = vcvt.s32.f32 %v254
      %v257 = vcvt.s32.f32 %v255
      %v258 = vmul.f32 %v231, %v256
      %v259 = vmul.f32 %v233, %v257
      %v260 = vsel %vm213, %v258, 0.0
      %v261 = vrot.slane %v260, 4
      %v262 = vadd.f32 %v260, %v261
      %v263 = vrot.slane %v262, 2
      %v264 = vadd.f32 %v262, %v263
      %v265 = vrot.slane %v264, 1
      %v266 = vadd.f32 %v264, %v265
      %v267 = vsel %vm213, %v259, 0.0
      %v268 = vrot.slane %v267, 4
      %v269 = vadd.f32 %v267, %v268
      %v270 = vrot.slane %v269, 2
      %v271 = vadd.f32 %v269, %v270
      %v272 = vrot.slane %v271, 1
      %v273 = vadd.f32 %v271, %v272
      %v274 = vrcp.pop %v240
      %v275 = vrcp.pop %v247
      %v276 = vmul.f32 %v266, %v274
      %v277 = vmul.f32 %v273, %v275
      %v278 = vadd.f32 %v276, 0.0001
      %v279 = vadd.f32 %v277, 0.0001
      %v280 = vlog2.pop %v278
      %v281 = vmul.f32 %v280, 0.6931472
      %v282 = vlog2.pop %v279
      %v283 = vmul.f32 %v282, 0.6931472
      %v284 = vsub.f32 1.0, %v278
      %v285 = vsub.f32 1.0, %v279
      %v286 = vmul.f32 %v284, %v284
      %v287 = vmul.f32 %v285, %v285
      %v288 = vmul.f32 %v286, -1.0
      %v289 = vmul.f32 %v287, -1.0
      %v290 = vmul.f32 %v288, %v281
      %v291 = vmul.f32 %v289, %v283
      %v292 = vld [vmem:[#allocation2] sm:$0x3]
      %v295 = vrot.slane %v291, 7
      %vm296 = vcmask 1040384
      %v297 = vsel %vm296, %v290, %v295
      %v299 = vadd.f32 %v292, %v297
      %v300 = vlaneseq
      %vm301 = vcmp.ge.s32.totalorder %v300, 0
      %vm302 = vcmp.lt.s32.totalorder %v300, 256
      %vm303 = vmand %vm301, %vm302
      %304 = vst.msk [vmem:[#allocation2] sm:$0x3] %vm303, %v299
      // Predicated region
      $region33: #{tpu_custom_call.1} parent=27 // pred_check
        %p305 = pneg %p201
      $region34: #{tpu_custom_call.1} parent=27 // pred_check_branch
        %307 = sbr.rel (%p305) target = $region36
      $region35: #{tpu_custom_call.1} parent=27 // pred_region
        %v308 = vld [vmem:[#allocation2] sm:$0x3]
        %v310 = vperm.slane %v308, 0
        %v311 = vperm.slane %v308, 1
        %v314 = vsel %vm296, %v310, 0.0
        %v315 = vsel %vm296, %v311, 0.0
        %v316 = vadd.f32 %v314, %v315
        %317 = vadd.xlane.f32.xlu0 %v316
        %v318 = vpop.xlane.xlu0 %317
        %vm319 = vcmask 0
        %320 = vst.msk [vmem:[%s200] sm:$0x1] %vm319, %v318
      $region36: #{tpu_custom_call.1} parent=27 // pred_fallthru
        _
      %p321 = scmp.lt.s32.totalorder %s17, 1
      %s322 = scalar_select %p321, %s17, 1
      %s323 = scalar_lea.vmem %s2, %s322
      // Predicated region
      $region37: #{tpu_custom_call.1} parent=27 // pred_check
        %p324 = pneg %p99
      $region38: #{tpu_custom_call.1} parent=27 // pred_check_branch
        %326 = sbr.rel (%p324) target = $region40
      $region39: #{tpu_custom_call.1} parent=27 // pred_region
        _
      $region40: #{tpu_custom_call.1} parent=27 // pred_fallthru
        _
    $region28: #{tpu_custom_call.1} parent=5 // pred_fallthru
      _
    %p327 = scmp.le.s32.totalorder 2, %s8
    // Predicated region
    $region41: #{tpu_custom_call.1} parent=5 // pred_check
      %p328 = pneg %p327
    $region42: #{tpu_custom_call.1} parent=5 // pred_check_branch
      %330 = sbr.rel (%p328) target = $region44
    $region43: #{tpu_custom_call.1} parent=5 // pred_region
      %s331 = ssub.s32 %s8, 2
      // Predicated region
      $region45: #{tpu_custom_call.1} parent=43 // pred_check
        %p332 = pneg %p105
      $region46: #{tpu_custom_call.1} parent=43 // pred_check_branch
        %334 = sbr.rel (%p332) target = $region48
      $region47: #{tpu_custom_call.1} parent=43 // pred_region
        %p335 = scmp.lt.s32.totalorder %s19, 1
        %s336 = scalar_select %p335, %s19, 1
        %s337 = scalar_lea.vmem %s2, %s336
      $region48: #{tpu_custom_call.1} parent=43 // pred_fallthru
        _
    $region44: #{tpu_custom_call.1} parent=5 // pred_fallthru
      _
  $region6: #{tpu_custom_call.1} parent=0 // loop_footer
    %s12 = sadd.s32 1, %s8
  $region7: #{tpu_custom_call.1} parent=0 // loop_footer_branch
    %7 = sbr.rel target = $region3
  $region8: #{tpu_custom_call.1} parent=0 // loop_exit
    _

</llo_original>
